<compile_context>
chip_gen: v7x
topology: tpu7x:2x2x1
jax: 0.10.0
libtpu: 0.0.40
codegen_flags: <defaults>
</compile_context>

<pallas_src>
import jax
import jax.numpy as jnp
from jax.experimental import pallas as pl
from jax.experimental.pallas import tpu as pltpu


def _seg_kernel(stats_ref, w_ref, b_ref, x_ref, mask_ref, logits_ref, xnorm_ref):
    """One grid step = one (sample, HW-tile).

    stats_ref  : (2*N,)                 f32  SMEM  [mean_0..mean_{N-1}, rstd_0..rstd_{N-1}]
    w_ref      : (Cin, Cout)            f32  SMEM  1x1-conv weight (scalars)
    b_ref      : (Cout,)                f32  SMEM  1x1-conv bias   (scalars)
    x_ref      : (Cin,  rows_tile, 128) f32  VMEM  input tile  (dense per-channel slabs)
    mask_ref   : (Cout, rows_tile, 128) f32  VMEM  softmax probabilities
    logits_ref : (Cout, rows_tile, 128) f32  VMEM  raw logits
    xnorm_ref  : (Cin,  rows_tile, 128) f32  VMEM  normalized input
    """
    c_in = x_ref.shape[0]
    c_out = mask_ref.shape[0]

    n = pl.program_id(0)
    num_samples = pl.num_programs(0)
    mean = stats_ref[n]
    rstd = stats_ref[num_samples + n]

    # --- _preprocess_x: per-sample standardization (stats precomputed) -------
    xs = []
    for ci in range(c_in):
        xn = (x_ref[ci] - mean) * rstd        # dense (rows_tile, 128)
        xnorm_ref[ci] = xn                    # direct per-channel store
        xs.append(xn)

    # --- _forward: 1x1 conv as unrolled VPU multiply-adds --------------------
    # (MXU would be <0.1% utilized at Cin=4/Cout=3; stay on the VPU instead.)
    rows = []
    for co in range(c_out):
        acc = xs[0] * w_ref[0, co] + b_ref[co]
        for ci in range(1, c_in):
            acc = acc + xs[ci] * w_ref[ci, co]
        logits_ref[co] = acc                  # direct per-channel store
        rows.append(acc)

    # --- y_mask: channel softmax, unrolled over Cout --------------------------
    m = rows[0]
    for r in rows[1:]:
        m = jnp.maximum(m, r)
    es = [jnp.exp(r - m) for r in rows]
    denom = es[0]
    for e in es[1:]:
        denom = denom + e
    inv = 1.0 / denom                         # exact (kernel is mem-bound)
    for co in range(c_out):
        mask_ref[co] = es[co] * inv


def _round_up(v: int, m: int) -> int:
    return (v + m - 1) // m * m


def _plan_hw_tiling(hw: int, target_rows: int = 128):
    """Pad HW to a 128-lane grid and pick the rows-per-tile.

    Returns (hw_padded, n_rows, rows_tile) with n_rows % rows_tile == 0 and
    rows_tile either == n_rows (full extent) or a multiple of 8.
    """
    hw_pad = _round_up(hw, 128)
    n_rows = hw_pad // 128
    if n_rows <= target_rows:
        return hw_pad, n_rows, n_rows         # single full-extent tile per sample
    hw_pad = _round_up(hw, target_rows * 128)
    n_rows = hw_pad // 128
    return hw_pad, n_rows, target_rows


@jax.jit
def seg_forward(x_nchw, w, b):
    """BaseSeg.forward equivalent.

    x_nchw : (N, C_in, H, W) float32
    w      : (C_in, C_out)   float32   (1x1 conv weight)
    b      : (C_out,) or (1, C_out) float32

    Returns (y_mask, y_logits, intermediate_outputs) all NCHW float32.
    """
    N, C_in, H, W = x_nchw.shape
    C_out = w.shape[1]
    HW = H * W

    x_nchw = x_nchw.astype(jnp.float32)
    w = w.astype(jnp.float32)
    b = b.reshape(C_out).astype(jnp.float32)

    # Per-sample stats (single fused pass). Clamp variance to avoid NaN from
    # E[x^2] - mean^2 cancellation; passed to the kernel as a flat SMEM vector.
    x_flat = x_nchw.reshape(N, C_in * HW)
    mean = jnp.mean(x_flat, axis=1)
    var = jnp.maximum(jnp.mean(x_flat * x_flat, axis=1) - mean * mean, 0.0)
    rstd = jax.lax.rsqrt(var + 1e-6)
    stats = jnp.concatenate([mean, rstd]).astype(jnp.float32)   # (2N,)

    # NCHW -> (N, C, n_rows, 128): pixels lane-dense, channels a plain leading dim.
    hw_pad, n_rows, rows_tile = _plan_hw_tiling(HW)
    x_rows = x_nchw.reshape(N, C_in, HW)
    if hw_pad != HW:
        x_rows = jnp.pad(x_rows, ((0, 0), (0, 0), (0, hw_pad - HW)))
    x4 = x_rows.reshape(N, C_in, n_rows, 128)

    n_hw_tiles = n_rows // rows_tile

    # Explicit VMEM budget: double-buffered in/out tiles (all channels) + headroom.
    per_step_bytes = rows_tile * 128 * 4 * (2 * C_in + 2 * C_out) * 2
    vmem_limit = int(min(max(4 * per_step_bytes, 16 << 20), 32 << 20))

    smem_spec = pl.BlockSpec(memory_space=pltpu.MemorySpace.SMEM)

    mask4, logits4, xnorm4 = pl.pallas_call(
        _seg_kernel,
        out_shape=(
            jax.ShapeDtypeStruct((N, C_out, n_rows, 128), jnp.float32),
            jax.ShapeDtypeStruct((N, C_out, n_rows, 128), jnp.float32),
            jax.ShapeDtypeStruct((N, C_in, n_rows, 128), jnp.float32),
        ),
        grid=(N, n_hw_tiles),
        in_specs=[
            smem_spec,  # stats (flat, SMEM)
            smem_spec,  # w
            smem_spec,  # b
            pl.BlockSpec((None, C_in, rows_tile, 128), lambda n, t: (n, 0, t, 0)),
        ],
        out_specs=[
            pl.BlockSpec((None, C_out, rows_tile, 128), lambda n, t: (n, 0, t, 0)),
            pl.BlockSpec((None, C_out, rows_tile, 128), lambda n, t: (n, 0, t, 0)),
            pl.BlockSpec((None, C_in, rows_tile, 128), lambda n, t: (n, 0, t, 0)),
        ],
        compiler_params=pltpu.CompilerParams(
            dimension_semantics=("parallel", "parallel"),
            vmem_limit_bytes=vmem_limit,
        ),
    )(stats, w, b, x4)

    def _unpack(a4, c):
        return a4.reshape(N, c, hw_pad)[:, :, :HW].reshape(N, c, H, W)

    y_mask = _unpack(mask4, C_out)
    y_logits = _unpack(logits4, C_out)
    intermediate_outputs = {"x_norm": _unpack(xnorm4, C_in)}
    # TODO(synk): checkpoint save/load, trainable_params/modules,
    # select_necessary_extra_inputs and train/eval mode from BaseSeg are
    # host-side nn.Module machinery with no kernel equivalent.
    return y_mask, y_logits, intermediate_outputs


def _ref_forward(x, w, b):
    """Pure-JAX reference with identical per-sample normalization semantics."""
    N, C_in, H, W = x.shape
    C_out = w.shape[1]
    x_flat = x.reshape(N, -1)
    mean = jnp.mean(x_flat, axis=1).reshape(N, 1, 1, 1)
    var = jnp.maximum(
        jnp.mean(x_flat * x_flat, axis=1).reshape(N, 1, 1, 1) - mean * mean, 0.0
    )
    x_n = (x - mean) * jax.lax.rsqrt(var + 1e-6)
    logits = jnp.einsum("nchw,co->nohw", x_n, w) + b.reshape(1, C_out, 1, 1)
    mask = jax.nn.softmax(logits, axis=1)
    return mask, logits, x_n


if __name__ == "__main__":
    key = jax.random.PRNGKey(0)
    k_x, k_w, k_b = jax.random.split(key, 3)

    N, C_in, H, W = 2, 4, 16, 16
    C_out = 3  # number of segmentation classes

    x = jax.random.normal(k_x, (N, C_in, H, W), dtype=jnp.float32)
    w = 0.1 * jax.random.normal(k_w, (C_in, C_out), dtype=jnp.float32)
    b = 0.01 * jax.random.normal(k_b, (C_out,), dtype=jnp.float32)

    y_mask, y_logits, interm = seg_forward(x, w, b)
    jax.block_until_ready((y_mask, y_logits, interm["x_norm"]))

    ref_mask, ref_logits, ref_xn = _ref_forward(x, w, b)
    assert jnp.allclose(interm["x_norm"], ref_xn, atol=1e-5, rtol=1e-5)
    assert jnp.allclose(y_logits, ref_logits, atol=1e-5, rtol=1e-5)
    assert jnp.allclose(y_mask, ref_mask, atol=1e-5, rtol=1e-5)
    assert jnp.allclose(jnp.sum(y_mask, axis=1), jnp.ones((N, H, W)), atol=1e-4)

    # Non-128-aligned spatial size exercises the HW zero-pad + output-slice path.
    H2 = W2 = 10
    x2 = jax.random.normal(k_x, (N, C_in, H2, W2), dtype=jnp.float32)
    m2, l2, i2 = seg_forward(x2, w, b)
    jax.block_until_ready((m2, l2, i2["x_norm"]))
    r_m2, r_l2, r_x2 = _ref_forward(x2, w, b)
    assert jnp.allclose(i2["x_norm"], r_x2, atol=1e-5, rtol=1e-5)
    assert jnp.allclose(l2, r_l2, atol=1e-5, rtol=1e-5)
    assert jnp.allclose(m2, r_m2, atol=1e-5, rtol=1e-5)

    print("KERNEL_OK")
</pallas_src>

<mosaic_0001>
module attributes {stable_mosaic.version = 11 : i64} {
  func.func @_seg_kernel(%arg0: i32, %arg1: i32, %arg2: memref<4xf32, #tpu.memory_space<smem>>, %arg3: memref<4x3xf32, #tpu.memory_space<smem>>, %arg4: memref<3xf32, #tpu.memory_space<smem>>, %arg5: memref<1x4x2x128xf32, #tpu.memory_space<vmem>>, %arg6: memref<1x3x2x128xf32, #tpu.memory_space<vmem>>, %arg7: memref<1x3x2x128xf32, #tpu.memory_space<vmem>>, %arg8: memref<1x4x2x128xf32, #tpu.memory_space<vmem>>) attributes {dimension_semantics = [#tpu.dimension_semantics<parallel>, #tpu.dimension_semantics<parallel>], iteration_bounds = array<i64: 2, 1>, scalar_prefetch = 0 : i64, scratch_operands = 0 : i64, tpu.core_type = #tpu.core_type<tc>, window_params = [{transform_indices = @transform_0, window_bounds = array<i64: 4>}, {transform_indices = @transform_1, window_bounds = array<i64: 4, 3>}, {transform_indices = @transform_2, window_bounds = array<i64: 3>}, {transform_indices = @transform_3, window_bounds = array<i64: 1, 4, 2, 128>}, {transform_indices = @transform_4, window_bounds = array<i64: 1, 3, 2, 128>}, {transform_indices = @transform_5, window_bounds = array<i64: 1, 3, 2, 128>}, {transform_indices = @transform_6, window_bounds = array<i64: 1, 4, 2, 128>}]} {
    %0 = arith.index_cast %arg0 : i32 to index
    %1 = memref.load %arg2[%0] : memref<4xf32, #tpu.memory_space<smem>>
    %c2_i32 = arith.constant 2 : i32
    %2 = arith.addi %c2_i32, %arg0 : i32
    %3 = arith.index_cast %2 : i32 to index
    %4 = memref.load %arg2[%3] : memref<4xf32, #tpu.memory_space<smem>>
    %c0 = arith.constant 0 : index
    %c0_0 = arith.constant 0 : index
    %c0_1 = arith.constant 0 : index
    %c0_2 = arith.constant 0 : index
    %5 = vector.load %arg5[%c0, %c0_0, %c0_1, %c0_2] : memref<1x4x2x128xf32, #tpu.memory_space<vmem>>, vector<1x1x2x128xf32>
    %6 = vector.shape_cast %5 : vector<1x1x2x128xf32> to vector<2x128xf32>
    %7 = vector.broadcast %1 : f32 to vector<2x128xf32>
    %8 = arith.subf %6, %7 : vector<2x128xf32>
    %9 = vector.broadcast %4 : f32 to vector<2x128xf32>
    %10 = arith.mulf %8, %9 : vector<2x128xf32>
    %c0_3 = arith.constant 0 : index
    %c0_4 = arith.constant 0 : index
    %c0_5 = arith.constant 0 : index
    %c0_6 = arith.constant 0 : index
    %11 = vector.load %arg8[%c0_3, %c0_4, %c0_5, %c0_6] : memref<1x4x2x128xf32, #tpu.memory_space<vmem>>, vector<1x1x2x128xf32>
    %12 = vector.shape_cast %11 : vector<1x1x2x128xf32> to vector<2x128xf32>
    %13 = vector.shape_cast %10 : vector<2x128xf32> to vector<1x1x2x128xf32>
    tpu.vector_store %arg8[%c0_3, %c0_4, %c0_5, %c0_6], %13 {strides = array<i32>} : memref<1x4x2x128xf32, #tpu.memory_space<vmem>>, vector<1x1x2x128xf32>,
    %c0_7 = arith.constant 0 : index
    %c1 = arith.constant 1 : index
    %c0_8 = arith.constant 0 : index
    %c0_9 = arith.constant 0 : index
    %14 = vector.load %arg5[%c0_7, %c1, %c0_8, %c0_9] : memref<1x4x2x128xf32, #tpu.memory_space<vmem>>, vector<1x1x2x128xf32>
    %15 = vector.shape_cast %14 : vector<1x1x2x128xf32> to vector<2x128xf32>
    %16 = vector.broadcast %1 : f32 to vector<2x128xf32>
    %17 = arith.subf %15, %16 : vector<2x128xf32>
    %18 = vector.broadcast %4 : f32 to vector<2x128xf32>
    %19 = arith.mulf %17, %18 : vector<2x128xf32>
    %c0_10 = arith.constant 0 : index
    %c1_11 = arith.constant 1 : index
    %c0_12 = arith.constant 0 : index
    %c0_13 = arith.constant 0 : index
    %20 = vector.load %arg8[%c0_10, %c1_11, %c0_12, %c0_13] : memref<1x4x2x128xf32, #tpu.memory_space<vmem>>, vector<1x1x2x128xf32>
    %21 = vector.shape_cast %20 : vector<1x1x2x128xf32> to vector<2x128xf32>
    %22 = vector.shape_cast %19 : vector<2x128xf32> to vector<1x1x2x128xf32>
    tpu.vector_store %arg8[%c0_10, %c1_11, %c0_12, %c0_13], %22 {strides = array<i32>} : memref<1x4x2x128xf32, #tpu.memory_space<vmem>>, vector<1x1x2x128xf32>,
    %c0_14 = arith.constant 0 : index
    %c2 = arith.constant 2 : index
    %c0_15 = arith.constant 0 : index
    %c0_16 = arith.constant 0 : index
    %23 = vector.load %arg5[%c0_14, %c2, %c0_15, %c0_16] : memref<1x4x2x128xf32, #tpu.memory_space<vmem>>, vector<1x1x2x128xf32>
    %24 = vector.shape_cast %23 : vector<1x1x2x128xf32> to vector<2x128xf32>
    %25 = vector.broadcast %1 : f32 to vector<2x128xf32>
    %26 = arith.subf %24, %25 : vector<2x128xf32>
    %27 = vector.broadcast %4 : f32 to vector<2x128xf32>
    %28 = arith.mulf %26, %27 : vector<2x128xf32>
    %c0_17 = arith.constant 0 : index
    %c2_18 = arith.constant 2 : index
    %c0_19 = arith.constant 0 : index
    %c0_20 = arith.constant 0 : index
    %29 = vector.load %arg8[%c0_17, %c2_18, %c0_19, %c0_20] : memref<1x4x2x128xf32, #tpu.memory_space<vmem>>, vector<1x1x2x128xf32>
    %30 = vector.shape_cast %29 : vector<1x1x2x128xf32> to vector<2x128xf32>
    %31 = vector.shape_cast %28 : vector<2x128xf32> to vector<1x1x2x128xf32>
    tpu.vector_store %arg8[%c0_17, %c2_18, %c0_19, %c0_20], %31 {strides = array<i32>} : memref<1x4x2x128xf32, #tpu.memory_space<vmem>>, vector<1x1x2x128xf32>,
    %c0_21 = arith.constant 0 : index
    %c3 = arith.constant 3 : index
    %c0_22 = arith.constant 0 : index
    %c0_23 = arith.constant 0 : index
    %32 = vector.load %arg5[%c0_21, %c3, %c0_22, %c0_23] : memref<1x4x2x128xf32, #tpu.memory_space<vmem>>, vector<1x1x2x128xf32>
    %33 = vector.shape_cast %32 : vector<1x1x2x128xf32> to vector<2x128xf32>
    %34 = vector.broadcast %1 : f32 to vector<2x128xf32>
    %35 = arith.subf %33, %34 : vector<2x128xf32>
    %36 = vector.broadcast %4 : f32 to vector<2x128xf32>
    %37 = arith.mulf %35, %36 : vector<2x128xf32>
    %c0_24 = arith.constant 0 : index
    %c3_25 = arith.constant 3 : index
    %c0_26 = arith.constant 0 : index
    %c0_27 = arith.constant 0 : index
    %38 = vector.load %arg8[%c0_24, %c3_25, %c0_26, %c0_27] : memref<1x4x2x128xf32, #tpu.memory_space<vmem>>, vector<1x1x2x128xf32>
    %39 = vector.shape_cast %38 : vector<1x1x2x128xf32> to vector<2x128xf32>
    %40 = vector.shape_cast %37 : vector<2x128xf32> to vector<1x1x2x128xf32>
    tpu.vector_store %arg8[%c0_24, %c3_25, %c0_26, %c0_27], %40 {strides = array<i32>} : memref<1x4x2x128xf32, #tpu.memory_space<vmem>>, vector<1x1x2x128xf32>,
    %c0_28 = arith.constant 0 : index
    %c0_29 = arith.constant 0 : index
    %41 = memref.load %arg3[%c0_28, %c0_29] : memref<4x3xf32, #tpu.memory_space<smem>>
    %42 = vector.broadcast %41 : f32 to vector<2x128xf32>
    %43 = arith.mulf %10, %42 : vector<2x128xf32>
    %c0_30 = arith.constant 0 : index
    %44 = memref.load %arg4[%c0_30] : memref<3xf32, #tpu.memory_space<smem>>
    %45 = vector.broadcast %44 : f32 to vector<2x128xf32>
    %46 = arith.addf %43, %45 : vector<2x128xf32>
    %c1_31 = arith.constant 1 : index
    %c0_32 = arith.constant 0 : index
    %47 = memref.load %arg3[%c1_31, %c0_32] : memref<4x3xf32, #tpu.memory_space<smem>>
    %48 = vector.broadcast %47 : f32 to vector<2x128xf32>
    %49 = arith.mulf %19, %48 : vector<2x128xf32>
    %50 = arith.addf %46, %49 : vector<2x128xf32>
    %c2_33 = arith.constant 2 : index
    %c0_34 = arith.constant 0 : index
    %51 = memref.load %arg3[%c2_33, %c0_34] : memref<4x3xf32, #tpu.memory_space<smem>>
    %52 = vector.broadcast %51 : f32 to vector<2x128xf32>
    %53 = arith.mulf %28, %52 : vector<2x128xf32>
    %54 = arith.addf %50, %53 : vector<2x128xf32>
    %c3_35 = arith.constant 3 : index
    %c0_36 = arith.constant 0 : index
    %55 = memref.load %arg3[%c3_35, %c0_36] : memref<4x3xf32, #tpu.memory_space<smem>>
    %56 = vector.broadcast %55 : f32 to vector<2x128xf32>
    %57 = arith.mulf %37, %56 : vector<2x128xf32>
    %58 = arith.addf %54, %57 : vector<2x128xf32>
    %c0_37 = arith.constant 0 : index
    %c0_38 = arith.constant 0 : index
    %c0_39 = arith.constant 0 : index
    %c0_40 = arith.constant 0 : index
    %59 = vector.load %arg7[%c0_37, %c0_38, %c0_39, %c0_40] : memref<1x3x2x128xf32, #tpu.memory_space<vmem>>, vector<1x1x2x128xf32>
    %60 = vector.shape_cast %59 : vector<1x1x2x128xf32> to vector<2x128xf32>
    %61 = vector.shape_cast %58 : vector<2x128xf32> to vector<1x1x2x128xf32>
    tpu.vector_store %arg7[%c0_37, %c0_38, %c0_39, %c0_40], %61 {strides = array<i32>} : memref<1x3x2x128xf32, #tpu.memory_space<vmem>>, vector<1x1x2x128xf32>,
    %c0_41 = arith.constant 0 : index
    %c1_42 = arith.constant 1 : index
    %62 = memref.load %arg3[%c0_41, %c1_42] : memref<4x3xf32, #tpu.memory_space<smem>>
    %63 = vector.broadcast %62 : f32 to vector<2x128xf32>
    %64 = arith.mulf %10, %63 : vector<2x128xf32>
    %c1_43 = arith.constant 1 : index
    %65 = memref.load %arg4[%c1_43] : memref<3xf32, #tpu.memory_space<smem>>
    %66 = vector.broadcast %65 : f32 to vector<2x128xf32>
    %67 = arith.addf %64, %66 : vector<2x128xf32>
    %c1_44 = arith.constant 1 : index
    %c1_45 = arith.constant 1 : index
    %68 = memref.load %arg3[%c1_44, %c1_45] : memref<4x3xf32, #tpu.memory_space<smem>>
    %69 = vector.broadcast %68 : f32 to vector<2x128xf32>
    %70 = arith.mulf %19, %69 : vector<2x128xf32>
    %71 = arith.addf %67, %70 : vector<2x128xf32>
    %c2_46 = arith.constant 2 : index
    %c1_47 = arith.constant 1 : index
    %72 = memref.load %arg3[%c2_46, %c1_47] : memref<4x3xf32, #tpu.memory_space<smem>>
    %73 = vector.broadcast %72 : f32 to vector<2x128xf32>
    %74 = arith.mulf %28, %73 : vector<2x128xf32>
    %75 = arith.addf %71, %74 : vector<2x128xf32>
    %c3_48 = arith.constant 3 : index
    %c1_49 = arith.constant 1 : index
    %76 = memref.load %arg3[%c3_48, %c1_49] : memref<4x3xf32, #tpu.memory_space<smem>>
    %77 = vector.broadcast %76 : f32 to vector<2x128xf32>
    %78 = arith.mulf %37, %77 : vector<2x128xf32>
    %79 = arith.addf %75, %78 : vector<2x128xf32>
    %c0_50 = arith.constant 0 : index
    %c1_51 = arith.constant 1 : index
    %c0_52 = arith.constant 0 : index
    %c0_53 = arith.constant 0 : index
    %80 = vector.load %arg7[%c0_50, %c1_51, %c0_52, %c0_53] : memref<1x3x2x128xf32, #tpu.memory_space<vmem>>, vector<1x1x2x128xf32>
    %81 = vector.shape_cast %80 : vector<1x1x2x128xf32> to vector<2x128xf32>
    %82 = vector.shape_cast %79 : vector<2x128xf32> to vector<1x1x2x128xf32>
    tpu.vector_store %arg7[%c0_50, %c1_51, %c0_52, %c0_53], %82 {strides = array<i32>} : memref<1x3x2x128xf32, #tpu.memory_space<vmem>>, vector<1x1x2x128xf32>,
    %c0_54 = arith.constant 0 : index
    %c2_55 = arith.constant 2 : index
    %83 = memref.load %arg3[%c0_54, %c2_55] : memref<4x3xf32, #tpu.memory_space<smem>>
    %84 = vector.broadcast %83 : f32 to vector<2x128xf32>
    %85 = arith.mulf %10, %84 : vector<2x128xf32>
    %c2_56 = arith.constant 2 : index
    %86 = memref.load %arg4[%c2_56] : memref<3xf32, #tpu.memory_space<smem>>
    %87 = vector.broadcast %86 : f32 to vector<2x128xf32>
    %88 = arith.addf %85, %87 : vector<2x128xf32>
    %c1_57 = arith.constant 1 : index
    %c2_58 = arith.constant 2 : index
    %89 = memref.load %arg3[%c1_57, %c2_58] : memref<4x3xf32, #tpu.memory_space<smem>>
    %90 = vector.broadcast %89 : f32 to vector<2x128xf32>
    %91 = arith.mulf %19, %90 : vector<2x128xf32>
    %92 = arith.addf %88, %91 : vector<2x128xf32>
    %c2_59 = arith.constant 2 : index
    %c2_60 = arith.constant 2 : index
    %93 = memref.load %arg3[%c2_59, %c2_60] : memref<4x3xf32, #tpu.memory_space<smem>>
    %94 = vector.broadcast %93 : f32 to vector<2x128xf32>
    %95 = arith.mulf %28, %94 : vector<2x128xf32>
    %96 = arith.addf %92, %95 : vector<2x128xf32>
    %c3_61 = arith.constant 3 : index
    %c2_62 = arith.constant 2 : index
    %97 = memref.load %arg3[%c3_61, %c2_62] : memref<4x3xf32, #tpu.memory_space<smem>>
    %98 = vector.broadcast %97 : f32 to vector<2x128xf32>
    %99 = arith.mulf %37, %98 : vector<2x128xf32>
    %100 = arith.addf %96, %99 : vector<2x128xf32>
    %c0_63 = arith.constant 0 : index
    %c2_64 = arith.constant 2 : index
    %c0_65 = arith.constant 0 : index
    %c0_66 = arith.constant 0 : index
    %101 = vector.load %arg7[%c0_63, %c2_64, %c0_65, %c0_66] : memref<1x3x2x128xf32, #tpu.memory_space<vmem>>, vector<1x1x2x128xf32>
    %102 = vector.shape_cast %101 : vector<1x1x2x128xf32> to vector<2x128xf32>
    %103 = vector.shape_cast %100 : vector<2x128xf32> to vector<1x1x2x128xf32>
    tpu.vector_store %arg7[%c0_63, %c2_64, %c0_65, %c0_66], %103 {strides = array<i32>} : memref<1x3x2x128xf32, #tpu.memory_space<vmem>>, vector<1x1x2x128xf32>,
    %104 = arith.maximumf %58, %79 : vector<2x128xf32>
    %105 = arith.maximumf %104, %100 : vector<2x128xf32>
    %106 = arith.subf %58, %105 : vector<2x128xf32>
    %107 = math.exp %106 : vector<2x128xf32>
    %108 = arith.subf %79, %105 : vector<2x128xf32>
    %109 = math.exp %108 : vector<2x128xf32>
    %110 = arith.subf %100, %105 : vector<2x128xf32>
    %111 = math.exp %110 : vector<2x128xf32>
    %112 = arith.addf %107, %109 : vector<2x128xf32>
    %113 = arith.addf %112, %111 : vector<2x128xf32>
    %cst = arith.constant 1.000000e+00 : f32
    %114 = vector.broadcast %cst : f32 to vector<2x128xf32>
    %115 = arith.divf %114, %113 : vector<2x128xf32>
    %116 = arith.mulf %107, %115 : vector<2x128xf32>
    %c0_67 = arith.constant 0 : index
    %c0_68 = arith.constant 0 : index
    %c0_69 = arith.constant 0 : index
    %c0_70 = arith.constant 0 : index
    %117 = vector.load %arg6[%c0_67, %c0_68, %c0_69, %c0_70] : memref<1x3x2x128xf32, #tpu.memory_space<vmem>>, vector<1x1x2x128xf32>
    %118 = vector.shape_cast %117 : vector<1x1x2x128xf32> to vector<2x128xf32>
    %119 = vector.shape_cast %116 : vector<2x128xf32> to vector<1x1x2x128xf32>
    tpu.vector_store %arg6[%c0_67, %c0_68, %c0_69, %c0_70], %119 {strides = array<i32>} : memref<1x3x2x128xf32, #tpu.memory_space<vmem>>, vector<1x1x2x128xf32>,
    %120 = arith.mulf %109, %115 : vector<2x128xf32>
    %c0_71 = arith.constant 0 : index
    %c1_72 = arith.constant 1 : index
    %c0_73 = arith.constant 0 : index
    %c0_74 = arith.constant 0 : index
    %121 = vector.load %arg6[%c0_71, %c1_72, %c0_73, %c0_74] : memref<1x3x2x128xf32, #tpu.memory_space<vmem>>, vector<1x1x2x128xf32>
    %122 = vector.shape_cast %121 : vector<1x1x2x128xf32> to vector<2x128xf32>
    %123 = vector.shape_cast %120 : vector<2x128xf32> to vector<1x1x2x128xf32>
    tpu.vector_store %arg6[%c0_71, %c1_72, %c0_73, %c0_74], %123 {strides = array<i32>} : memref<1x3x2x128xf32, #tpu.memory_space<vmem>>, vector<1x1x2x128xf32>,
    %124 = arith.mulf %111, %115 : vector<2x128xf32>
    %c0_75 = arith.constant 0 : index
    %c2_76 = arith.constant 2 : index
    %c0_77 = arith.constant 0 : index
    %c0_78 = arith.constant 0 : index
    %125 = vector.load %arg6[%c0_75, %c2_76, %c0_77, %c0_78] : memref<1x3x2x128xf32, #tpu.memory_space<vmem>>, vector<1x1x2x128xf32>
    %126 = vector.shape_cast %125 : vector<1x1x2x128xf32> to vector<2x128xf32>
    %127 = vector.shape_cast %124 : vector<2x128xf32> to vector<1x1x2x128xf32>
    tpu.vector_store %arg6[%c0_75, %c2_76, %c0_77, %c0_78], %127 {strides = array<i32>} : memref<1x3x2x128xf32, #tpu.memory_space<vmem>>, vector<1x1x2x128xf32>,
    return
  }
  func.func @transform_0(%arg0: i32, %arg1: i32) -> i32 {
    %c0_i32 = arith.constant 0 : i32
    %c0_i32_0 = arith.constant 0 : i32
    return %c0_i32 : i32
  }
  func.func @transform_1(%arg0: i32, %arg1: i32) -> (i32, i32) {
    %c0_i32 = arith.constant 0 : i32
    %c0_i32_0 = arith.constant 0 : i32
    %c0_i32_1 = arith.constant 0 : i32
    return %c0_i32, %c0_i32_0 : i32, i32
  }
  func.func @transform_2(%arg0: i32, %arg1: i32) -> i32 {
    %c0_i32 = arith.constant 0 : i32
    %c0_i32_0 = arith.constant 0 : i32
    return %c0_i32 : i32
  }
  func.func @transform_3(%arg0: i32, %arg1: i32) -> (i32, i32, i32, i32) {
    %c0_i32 = arith.constant 0 : i32
    %c0_i32_0 = arith.constant 0 : i32
    %c0_i32_1 = arith.constant 0 : i32
    return %arg0, %c0_i32, %arg1, %c0_i32_0 : i32, i32, i32, i32
  }
  func.func @transform_4(%arg0: i32, %arg1: i32) -> (i32, i32, i32, i32) {
    %c0_i32 = arith.constant 0 : i32
    %c0_i32_0 = arith.constant 0 : i32
    %c0_i32_1 = arith.constant 0 : i32
    return %arg0, %c0_i32, %arg1, %c0_i32_0 : i32, i32, i32, i32
  }
  func.func @transform_5(%arg0: i32, %arg1: i32) -> (i32, i32, i32, i32) {
    %c0_i32 = arith.constant 0 : i32
    %c0_i32_0 = arith.constant 0 : i32
    %c0_i32_1 = arith.constant 0 : i32
    return %arg0, %c0_i32, %arg1, %c0_i32_0 : i32, i32, i32, i32
  }
  func.func @transform_6(%arg0: i32, %arg1: i32) -> (i32, i32, i32, i32) {
    %c0_i32 = arith.constant 0 : i32
    %c0_i32_0 = arith.constant 0 : i32
    %c0_i32_1 = arith.constant 0 : i32
    return %arg0, %c0_i32, %arg1, %c0_i32_0 : i32, i32, i32, i32
  }
}

</mosaic_0001>

<llo_original>
// kernel: seg_forward.1
$region0: #{seg_forward.1}
  #allocation0 [shape = 'u32[]', space=smem, size = 0x4, offset = 0x4, fixed_abs, tag = 'smem constant byte address 0x4 - core index']
  #allocation1 [shape = 'u32[144,128]{1,0:T(1,128)}', space=vmem, size = 0x12000, scoped, tag = 'internal scratch']
  %s0 = inlined_call_operand.vmem [shape: f32[4], index: 0, kind: input, shape index: {}]
  %s1 = inlined_call_operand.vmem [shape: f32[4,3], index: 1, kind: input, shape index: {}]
  %s2 = inlined_call_operand.vmem [shape: f32[3], index: 2, kind: input, shape index: {}]
  %s3 = inlined_call_operand.vmem [shape: f32[2,4,2,128], index: 3, kind: input, shape index: {}]
  %s4 = inlined_call_operand.vmem [shape: f32[2,3,2,128], index: 4, kind: output, shape index: {0}]
  %s5 = inlined_call_operand.vmem [shape: f32[2,3,2,128], index: 5, kind: output, shape index: {1}]
  %s6 = inlined_call_operand.vmem [shape: f32[2,4,2,128], index: 6, kind: output, shape index: {2}]
  %7 = xla_tuple %s4, %s5, %s6
  %s8 = sld [smem:[#allocation0]]
  $region77: #{seg_forward.1} parent=0
    _
  %s10 = ssub.s32 1, %s8
  %s11 = scalar_select 0, %s10, %s8
  $region1: #{seg_forward.1} parent=0
    #allocation2 [shape = 'u8[512]{0}', space=smem, size = 0x200, scoped, tag = 'input window, operand 0, single buffered']
    #allocation3 [shape = 's32[2]{0}', space=sflag, size = 0x8, scoped, tag = 'scoped memory for seg_forward.1']
    #allocation4 [shape = 'u8[2048]{0}', space=smem, size = 0x800, scoped, tag = 'input window, operand 1, single buffered']
    #allocation5 [shape = 's32[1]{0}', space=sflag, size = 0x4, scoped, tag = 'scoped memory for seg_forward.1']
    #allocation6 [shape = 'u8[512]{0}', space=smem, size = 0x200, scoped, tag = 'input window, operand 2, single buffered']
    %12 = vsyncpa [#allocation3], 0
    %13 = vsyncpa [#allocation5], 0
    loop: start=0, step=1, limit=4
    $region2: #{seg_forward.1} parent=1 // loop_pre_header
      _
    $region3: #{seg_forward.1} parent=1 // loop_header
      %s15 = sphi 0, %s19
      %p16 = scmp.ge.s32.totalorder %s15, 4
      %s22 = sphi 0, %s34
      %s23 = sphi 0, %s30
      %s24 = sphi 0, %s22
      %s25 = sphi 0, %s23
      %s26 = sphi 0, %s24
      %s27 = sphi 0, %s25
      %s35 = sphi 0, %s35
      %s37 = sphi 0, %s35
      %s38 = sphi 0, %s37
      %s52 = sphi 0, %s38
      %s56 = sphi 0, %s56
      %s58 = sphi 0, %s56
      %s59 = sphi 0, %s58
      %s73 = sphi 0, %s59
      %s77 = sphi 0, %s77
      %s79 = sphi 0, %s77
      %s80 = sphi 0, %s79
      %s94 = sphi 0, %s80
      %s102 = sphi 0, %s104
      %s105 = sphi 0, %s102
      %s106 = sphi 0, %s105
      %s122 = sphi 0, %s106
      %s130 = sphi 0, %s132
      %s133 = sphi 0, %s130
      %s134 = sphi 0, %s133
      %s150 = sphi 0, %s134
      %s158 = sphi 0, %s160
      %s161 = sphi 0, %s158
      %s162 = sphi 0, %s161
      %s178 = sphi 0, %s162
      %s186 = sphi 0, %s188
      %s189 = sphi 0, %s186
      %s190 = sphi 0, %s189
      %s206 = sphi 0, %s190
    $region4: #{seg_forward.1} parent=1 // loop_header_branch
      %18 = sbr.rel (%p16) target = $region8
    $region5: #{seg_forward.1} parent=1 // loop_body
      %s20 = ssub.s32 %s15, 1
      %s21 = ssub.s32 %s15, 2
      %s28 = sadd.s32 1, %s23
      %p29 = scmp.ge.s32.totalorder %s28, 1
      %s30 = scalar_select %p29, 0, %s28
      %s31 = sadd.s32 1, %s22
      %s32 = scalar_select %p29, %s31, %s22
      %p33 = scmp.ge.s32.totalorder %s32, 2
      %s34 = scalar_select %p33, 0, %s32
      %s36 = sadd.s32 %s35, 1
      %p39 = scmp.eq.s32.totalorder %s15, 1
      %p40 = scmp.ne.s32.totalorder %s35, %s37
      %p41 = scmp.eq.s32.totalorder %s15, 0
      %p42 = por %p40, %p41
      %p43 = scmp.ne.s32.totalorder %s35, %s37
      %p44 = scmp.eq.s32.totalorder %s20, 1
      %p45 = por %p43, %p44
      %p46 = scmp.ne.s32.totalorder %s37, %s38
      %p47 = scmp.eq.s32.totalorder %s20, 0
      %p48 = por %p46, %p47
      %p49 = scmp.ne.s32.totalorder %s37, %s38
      %p50 = scmp.eq.s32.totalorder %s21, 1
      %p51 = por %p49, %p50
      %p53 = scmp.ne.s32.totalorder %s38, %s52
      %p54 = scmp.eq.s32.totalorder %s21, 0
      %p55 = por %p53, %p54
      %s57 = sadd.s32 %s56, 1
      %p60 = scmp.eq.s32.totalorder %s15, 1
      %p61 = scmp.ne.s32.totalorder %s56, %s58
      %p62 = scmp.eq.s32.totalorder %s15, 0
      %p63 = por %p61, %p62
      %p64 = scmp.ne.s32.totalorder %s56, %s58
      %p65 = scmp.eq.s32.totalorder %s20, 1
      %p66 = por %p64, %p65
      %p67 = scmp.ne.s32.totalorder %s58, %s59
      %p68 = scmp.eq.s32.totalorder %s20, 0
      %p69 = por %p67, %p68
      %p70 = scmp.ne.s32.totalorder %s58, %s59
      %p71 = scmp.eq.s32.totalorder %s21, 1
      %p72 = por %p70, %p71
      %p74 = scmp.ne.s32.totalorder %s59, %s73
      %p75 = scmp.eq.s32.totalorder %s21, 0
      %p76 = por %p74, %p75
      %s78 = sadd.s32 %s77, 1
      %p81 = scmp.eq.s32.totalorder %s15, 1
      %p82 = scmp.ne.s32.totalorder %s77, %s79
      %p83 = scmp.eq.s32.totalorder %s15, 0
      %p84 = por %p82, %p83
      %p85 = scmp.ne.s32.totalorder %s77, %s79
      %p86 = scmp.eq.s32.totalorder %s20, 1
      %p87 = por %p85, %p86
      %p88 = scmp.ne.s32.totalorder %s79, %s80
      %p89 = scmp.eq.s32.totalorder %s20, 0
      %p90 = por %p88, %p89
      %p91 = scmp.ne.s32.totalorder %s79, %s80
      %p92 = scmp.eq.s32.totalorder %s21, 1
      %p93 = por %p91, %p92
      %p95 = scmp.ne.s32.totalorder %s80, %s94
      %p96 = scmp.eq.s32.totalorder %s21, 0
      %p97 = por %p95, %p96
      %s98 = ssub.s32 %s22, %s34
      %s99 = ssub.s32 %s23, %s30
      %s100 = sor.u32 %s98, %s99
      %p101 = scmp.eq.s32.totalorder %s100, 0
      %s103 = sadd.s32 %s102, 1
      %s104 = scalar_select %p101, %s102, %s103
      %p107 = pneg %p101
      %p108 = scmp.eq.s32.totalorder %s15, 1
      %p109 = por %p107, %p108
      %p110 = scmp.ne.s32.totalorder %s102, %s105
      %p111 = scmp.eq.s32.totalorder %s15, 0
      %p112 = por %p110, %p111
      %p113 = scmp.ne.s32.totalorder %s102, %s105
      %p114 = scmp.eq.s32.totalorder %s20, 1
      %p115 = por %p113, %p114
      %p116 = scmp.ne.s32.totalorder %s105, %s106
      %p117 = scmp.eq.s32.totalorder %s20, 0
      %p118 = por %p116, %p117
      %p119 = scmp.ne.s32.totalorder %s105, %s106
      %p120 = scmp.eq.s32.totalorder %s21, 1
      %p121 = por %p119, %p120
      %p123 = scmp.ne.s32.totalorder %s106, %s122
      %p124 = scmp.eq.s32.totalorder %s21, 0
      %p125 = por %p123, %p124
      %s126 = ssub.s32 %s22, %s34
      %s127 = ssub.s32 %s23, %s30
      %s128 = sor.u32 %s126, %s127
      %p129 = scmp.eq.s32.totalorder %s128, 0
      %s131 = sadd.s32 %s130, 1
      %s132 = scalar_select %p129, %s130, %s131
      %p135 = pneg %p129
      %p136 = scmp.eq.s32.totalorder %s15, 1
      %p137 = por %p135, %p136
      %p138 = scmp.ne.s32.totalorder %s130, %s133
      %p139 = scmp.eq.s32.totalorder %s15, 0
      %p140 = por %p138, %p139
      %p141 = scmp.ne.s32.totalorder %s130, %s133
      %p142 = scmp.eq.s32.totalorder %s20, 1
      %p143 = por %p141, %p142
      %p144 = scmp.ne.s32.totalorder %s133, %s134
      %p145 = scmp.eq.s32.totalorder %s20, 0
      %p146 = por %p144, %p145
      %p147 = scmp.ne.s32.totalorder %s133, %s134
      %p148 = scmp.eq.s32.totalorder %s21, 1
      %p149 = por %p147, %p148
      %p151 = scmp.ne.s32.totalorder %s134, %s150
      %p152 = scmp.eq.s32.totalorder %s21, 0
      %p153 = por %p151, %p152
      %s154 = ssub.s32 %s22, %s34
      %s155 = ssub.s32 %s23, %s30
      %s156 = sor.u32 %s154, %s155
      %p157 = scmp.eq.s32.totalorder %s156, 0
      %s159 = sadd.s32 %s158, 1
      %s160 = scalar_select %p157, %s158, %s159
      %p163 = pneg %p157
      %p164 = scmp.eq.s32.totalorder %s15, 1
      %p165 = por %p163, %p164
      %p166 = scmp.ne.s32.totalorder %s158, %s161
      %p167 = scmp.eq.s32.totalorder %s15, 0
      %p168 = por %p166, %p167
      %p169 = scmp.ne.s32.totalorder %s158, %s161
      %p170 = scmp.eq.s32.totalorder %s20, 1
      %p171 = por %p169, %p170
      %p172 = scmp.ne.s32.totalorder %s161, %s162
      %p173 = scmp.eq.s32.totalorder %s20, 0
      %p174 = por %p172, %p173
      %p175 = scmp.ne.s32.totalorder %s161, %s162
      %p176 = scmp.eq.s32.totalorder %s21, 1
      %p177 = por %p175, %p176
      %p179 = scmp.ne.s32.totalorder %s162, %s178
      %p180 = scmp.eq.s32.totalorder %s21, 0
      %p181 = por %p179, %p180
      %s182 = ssub.s32 %s22, %s34
      %s183 = ssub.s32 %s23, %s30
      %s184 = sor.u32 %s182, %s183
      %p185 = scmp.eq.s32.totalorder %s184, 0
      %s187 = sadd.s32 %s186, 1
      %s188 = scalar_select %p185, %s186, %s187
      %p191 = pneg %p185
      %p192 = scmp.eq.s32.totalorder %s15, 1
      %p193 = por %p191, %p192
      %p194 = scmp.ne.s32.totalorder %s186, %s189
      %p195 = scmp.eq.s32.totalorder %s15, 0
      %p196 = por %p194, %p195
      %p197 = scmp.ne.s32.totalorder %s186, %s189
      %p198 = scmp.eq.s32.totalorder %s20, 1
      %p199 = por %p197, %p198
      %p200 = scmp.ne.s32.totalorder %s189, %s190
      %p201 = scmp.eq.s32.totalorder %s20, 0
      %p202 = por %p200, %p201
      %p203 = scmp.ne.s32.totalorder %s189, %s190
      %p204 = scmp.eq.s32.totalorder %s21, 1
      %p205 = por %p203, %p204
      %p207 = scmp.ne.s32.totalorder %s190, %s206
      %p208 = scmp.eq.s32.totalorder %s21, 0
      %p209 = por %p207, %p208
      %p210 = scmp.le.s32.totalorder 1, %s15
      %p211 = scmp.lt.s32.totalorder %s15, 3
      %p212 = pnand %p210, %p211
      %p213 = pneg %p212
      // Predicated region
      $region9: #{seg_forward.1} parent=5 // pred_check
        _
      $region10: #{seg_forward.1} parent=5 // pred_check_branch
        %215 = sbr.rel (%p212) target = $region12
      $region11: #{seg_forward.1} parent=5 // pred_region
        %s216 = ssub.s32 %s15, 1
        // Predicated region
        $region13: #{seg_forward.1} parent=11 // pred_check
          %p217 = pneg %p48
        $region14: #{seg_forward.1} parent=11 // pred_check_branch
          %219 = sbr.rel (%p217) target = $region16
        $region15: #{seg_forward.1} parent=11 // pred_region
          %s221 = ssub.s32 16, 16
          %222 = vsyncadd [#allocation3], %s221
          %s224 = sshll.u32 %s0, 4
          %s225 = int_to_ptr.vmem [resolvable:$true] %s224
          %227 = dma.vmem_to_smem %s225, 16, [#allocation2], [#allocation3]
        $region16: #{seg_forward.1} parent=11 // pred_fallthru
          _
        // Predicated region
        $region17: #{seg_forward.1} parent=11 // pred_check
          %p228 = pneg %p69
        $region18: #{seg_forward.1} parent=11 // pred_check_branch
          %230 = sbr.rel (%p228) target = $region20
        $region19: #{seg_forward.1} parent=11 // pred_region
          %s232 = ssub.s32 64, 64
          %233 = vsyncadd [#allocation5], %s232
          %s235 = sshll.u32 %s1, 4
          %s236 = int_to_ptr.vmem [resolvable:$true] %s235
          %238 = dma.vmem_to_smem %s236, 64, [#allocation4], [#allocation5]
        $region20: #{seg_forward.1} parent=11 // pred_fallthru
          _
        // Predicated region
        $region21: #{seg_forward.1} parent=11 // pred_check
          %p239 = pneg %p90
        $region22: #{seg_forward.1} parent=11 // pred_check_branch
          %241 = sbr.rel (%p239) target = $region24
        $region23: #{seg_forward.1} parent=11 // pred_region
          %s243 = ssub.s32 16, 16
          %244 = vsyncadd [#allocation5], %s243
          %s246 = sshll.u32 %s2, 4
          %s247 = int_to_ptr.vmem [resolvable:$true] %s246
          %249 = dma.vmem_to_smem %s247, 16, [#allocation6], [#allocation5]
        $region24: #{seg_forward.1} parent=11 // pred_fallthru
          _
      $region12: #{seg_forward.1} parent=5 // pred_fallthru
        _
      %p250 = scmp.lt.s32.totalorder %s15, 2
      // Predicated region
      $region25: #{seg_forward.1} parent=5 // pred_check
        %p251 = pneg %p250
      $region26: #{seg_forward.1} parent=5 // pred_check_branch
        %253 = sbr.rel (%p251) target = $region28
      $region27: #{seg_forward.1} parent=5 // pred_region
        // Predicated region
        $region29: #{seg_forward.1} parent=27 // pred_check
          %p254 = pneg %p112
        $region30: #{seg_forward.1} parent=27 // pred_check_branch
          %256 = sbr.rel (%p254) target = $region32
        $region31: #{seg_forward.1} parent=27 // pred_region
          %p257 = scmp.lt.s32.totalorder %s22, 1
          %s258 = scalar_select %p257, %s22, 1
          %p259 = scmp.lt.s32.totalorder %s23, 0
          %s260 = scalar_select %p259, %s23, 0
          %s261 = smul.addr %s258, 4
          %s262 = sadd.s32 %s260, %s261
          %s263 = smul.addr %s262, 2
          %s264 = scalar_lea.vmem %s3, %s263
        $region32: #{seg_forward.1} parent=27 // pred_fallthru
          _
      $region28: #{seg_forward.1} parent=5 // pred_fallthru
        _
      %p265 = scmp.le.s32.totalorder 1, %s15
      %p266 = scmp.lt.s32.totalorder %s15, 3
      %p267 = pnand %p265, %p266
      %p268 = pneg %p267
      // Predicated region
      $region33: #{seg_forward.1} parent=5 // pred_check
        _
      $region34: #{seg_forward.1} parent=5 // pred_check_branch
        %270 = sbr.rel (%p267) target = $region36
      $region35: #{seg_forward.1} parent=5 // pred_region
        %s271 = ssub.s32 %s15, 1
        // Predicated region
        $region37: #{seg_forward.1} parent=35 // pred_check
          %p272 = pneg %p48
        $region38: #{seg_forward.1} parent=35 // pred_check_branch
          %274 = sbr.rel (%p272) target = $region40
        $region39: #{seg_forward.1} parent=35 // pred_region
          %275 = dma.done [#allocation3], 16
        $region40: #{seg_forward.1} parent=35 // pred_fallthru
          _
        // Predicated region
        $region41: #{seg_forward.1} parent=35 // pred_check
          %p276 = pneg %p69
        $region42: #{seg_forward.1} parent=35 // pred_check_branch
          %278 = sbr.rel (%p276) target = $region44
        $region43: #{seg_forward.1} parent=35 // pred_region
          %279 = dma.done [#allocation5], 64
        $region44: #{seg_forward.1} parent=35 // pred_fallthru
          _
        // Predicated region
        $region45: #{seg_forward.1} parent=35 // pred_check
          %p280 = pneg %p90
        $region46: #{seg_forward.1} parent=35 // pred_check_branch
          %282 = sbr.rel (%p280) target = $region48
        $region47: #{seg_forward.1} parent=35 // pred_region
          %283 = dma.done [#allocation5], 16
        $region48: #{seg_forward.1} parent=35 // pred_fallthru
          _
        %284 = sfence
        %p285 = pneg %p48
        %p286 = pneg %p45
        %p287 = pneg %p69
        %p288 = pneg %p66
        %p289 = pneg %p90
        %p290 = pneg %p87
        %p291 = scmp.lt.s32.totalorder %s24, 1
        %s292 = scalar_select %p291, %s24, 1
        %p293 = scmp.lt.s32.totalorder %s25, 0
        %s294 = scalar_select %p293, %s25, 0
        %s295 = smul.addr %s292, 4
        %s296 = sadd.s32 %s294, %s295
        %s297 = smul.addr %s296, 2
        %s298 = scalar_lea.vmem %s3, %s297
        %p299 = pneg %p118
        %p300 = pneg %p115
        %p301 = pneg %p146
        %p302 = pneg %p143
        %p303 = scmp.lt.s32.totalorder %s24, 1
        %s304 = scalar_select %p303, %s24, 1
        %p305 = scmp.lt.s32.totalorder %s25, 0
        %s306 = scalar_select %p305, %s25, 0
        %s307 = smul.addr %s304, 3
        %s308 = sadd.s32 %s306, %s307
        %s309 = smul.addr %s308, 2
        %s310 = scalar_lea.vmem %s4, %s309
        %p311 = pneg %p174
        %p312 = pneg %p171
        %p313 = scmp.lt.s32.totalorder %s24, 1
        %s314 = scalar_select %p313, %s24, 1
        %p315 = scmp.lt.s32.totalorder %s25, 0
        %s316 = scalar_select %p315, %s25, 0
        %s317 = smul.addr %s314, 3
        %s318 = sadd.s32 %s316, %s317
        %s319 = smul.addr %s318, 2
        %s320 = scalar_lea.vmem %s5, %s319
        %p321 = pneg %p202
        %p322 = pneg %p199
        %p323 = scmp.lt.s32.totalorder %s24, 1
        %s324 = scalar_select %p323, %s24, 1
        %p325 = scmp.lt.s32.totalorder %s25, 0
        %s326 = scalar_select %p325, %s25, 0
        %s327 = smul.addr %s324, 4
        %s328 = sadd.s32 %s326, %s327
        %s329 = smul.addr %s328, 2
        %s330 = scalar_lea.vmem %s6, %s329
        %p331 = scmp.lt.s32.totalorder %s24, 1
        %s332 = scalar_select %p331, %s24, 1
        %p333 = scmp.lt.s32.totalorder %s25, 0
        %s334 = scalar_select %p333, %s25, 0
        %s335 = smul.addr %s332, 4
        %s336 = sadd.s32 %s334, %s335
        %s337 = smul.addr %s336, 2
        %s338 = scalar_lea.vmem %s3, %s337
        %p339 = scmp.lt.s32.totalorder %s24, 1
        %s340 = scalar_select %p339, %s24, 1
        %p341 = scmp.lt.s32.totalorder %s25, 0
        %s342 = scalar_select %p341, %s25, 0
        %s343 = smul.addr %s340, 3
        %s344 = sadd.s32 %s342, %s343
        %s345 = smul.addr %s344, 2
        %s346 = scalar_lea.vmem %s4, %s345
        %p347 = scmp.lt.s32.totalorder %s24, 1
        %s348 = scalar_select %p347, %s24, 1
        %p349 = scmp.lt.s32.totalorder %s25, 0
        %s350 = scalar_select %p349, %s25, 0
        %s351 = smul.addr %s348, 3
        %s352 = sadd.s32 %s350, %s351
        %s353 = smul.addr %s352, 2
        %s354 = scalar_lea.vmem %s5, %s353
        %p355 = scmp.lt.s32.totalorder %s24, 1
        %s356 = scalar_select %p355, %s24, 1
        %p357 = scmp.lt.s32.totalorder %s25, 0
        %s358 = scalar_select %p357, %s25, 0
        %s359 = smul.addr %s356, 4
        %s360 = sadd.s32 %s358, %s359
        %s361 = smul.addr %s360, 2
        %s362 = scalar_lea.vmem %s6, %s361
        %s363 = sld [smem:[#allocation2 + %s24]]
        %s364 = sadd.s32 %s24, 2
        %s365 = sld [smem:[#allocation2 + %s364]]
        %v366 = vld [vmem:[%s338] sm:$0x3]
        %v367 = vstv %s363
        %v368 = vsub.f32 %v366, %v367
        %v369 = vstv %s365
        %v370 = vmul.f32 %v368, %v369
        %371 = vst [vmem:[%s362] sm:$0x3] %v370
        %s372 = scalar_lea.vmem %s338, 2
        %v373 = vld [vmem:[%s372] sm:$0x3]
        %v374 = vsub.f32 %v373, %v367
        %v375 = vmul.f32 %v374, %v369
        %s376 = scalar_lea.vmem %s362, 2
        %377 = vst [vmem:[%s376] sm:$0x3] %v375
        %s378 = scalar_lea.vmem %s338, 4
        %v379 = vld [vmem:[%s378] sm:$0x3]
        %v380 = vsub.f32 %v379, %v367
        %v381 = vmul.f32 %v380, %v369
        %s382 = scalar_lea.vmem %s362, 4
        %383 = vst [vmem:[%s382] sm:$0x3] %v381
        %s384 = scalar_lea.vmem %s338, 6
        %v385 = vld [vmem:[%s384] sm:$0x3]
        %v386 = vsub.f32 %v385, %v367
        %v387 = vmul.f32 %v386, %v369
        %s388 = scalar_lea.vmem %s362, 6
        %389 = vst [vmem:[%s388] sm:$0x3] %v387
        %s390 = sld [smem:[#allocation4]]
        %v391 = vstv %s390
        %v392 = vmul.f32 %v370, %v391
        %s393 = sld [smem:[#allocation6]]
        %v394 = vstv %s393
        %v395 = vadd.f32 %v392, %v394
        %s396 = sld [smem:[#allocation4 + $0x80]]
        %v397 = vstv %s396
        %v398 = vmul.f32 %v375, %v397
        %v399 = vadd.f32 %v395, %v398
        %s400 = sld [smem:[#allocation4 + $0x100]]
        %v401 = vstv %s400
        %v402 = vmul.f32 %v381, %v401
        %v403 = vadd.f32 %v399, %v402
        %s404 = sld [smem:[#allocation4 + $0x180]]
        %v405 = vstv %s404
        %v406 = vmul.f32 %v387, %v405
        %v407 = vadd.f32 %v403, %v406
        %408 = vst [vmem:[%s354] sm:$0x3] %v407
        %s409 = sld [smem:[#allocation4 + $0x1]]
        %v410 = vstv %s409
        %v411 = vmul.f32 %v370, %v410
        %s412 = sld [smem:[#allocation6 + $0x1]]
        %v413 = vstv %s412
        %v414 = vadd.f32 %v411, %v413
        %s415 = sld [smem:[#allocation4 + $0x81]]
        %v416 = vstv %s415
        %v417 = vmul.f32 %v375, %v416
        %v418 = vadd.f32 %v414, %v417
        %s419 = sld [smem:[#allocation4 + $0x101]]
        %v420 = vstv %s419
        %v421 = vmul.f32 %v381, %v420
        %v422 = vadd.f32 %v418, %v421
        %s423 = sld [smem:[#allocation4 + $0x181]]
        %v424 = vstv %s423
        %v425 = vmul.f32 %v387, %v424
        %v426 = vadd.f32 %v422, %v425
        %s427 = scalar_lea.vmem %s354, 2
        %428 = vst [vmem:[%s427] sm:$0x3] %v426
        %s429 = sld [smem:[#allocation4 + $0x2]]
        %v430 = vstv %s429
        %v431 = vmul.f32 %v370, %v430
        %s432 = sld [smem:[#allocation6 + $0x2]]
        %v433 = vstv %s432
        %v434 = vadd.f32 %v431, %v433
        %s435 = sld [smem:[#allocation4 + $0x82]]
        %v436 = vstv %s435
        %v437 = vmul.f32 %v375, %v436
        %v438 = vadd.f32 %v434, %v437
        %s439 = sld [smem:[#allocation4 + $0x102]]
        %v440 = vstv %s439
        %v441 = vmul.f32 %v381, %v440
        %v442 = vadd.f32 %v438, %v441
        %s443 = sld [smem:[#allocation4 + $0x182]]
        %v444 = vstv %s443
        %v445 = vmul.f32 %v387, %v444
        %v446 = vadd.f32 %v442, %v445
        %s447 = scalar_lea.vmem %s354, 4
        %448 = vst [vmem:[%s447] sm:$0x3] %v446
        %v449 = vmax.f32 %v407, %v426
        %v450 = vmax.f32 %v449, %v446
        %v451 = vsub.f32 %v407, %v450
        %v452 = vmul.f32 %v451, 1.442695
        %v453 = vpow.pop %v452
        %v454 = vsub.f32 %v426, %v450
        %v455 = vmul.f32 %v454, 1.442695
        %v456 = vpow.pop %v455
        %v457 = vsub.f32 %v446, %v450
        %v458 = vmul.f32 %v457, 1.442695
        %v459 = vpow.pop %v458
        %v460 = vadd.f32 %v453, %v456
        %v461 = vadd.f32 %v460, %v459
        %v462 = vrcp.pop %v461
        %v463 = vmul.f32 1.0, %v462
        %v464 = vmul.f32 %v453, %v463
        %465 = vst [vmem:[%s346] sm:$0x3] %v464
        %v466 = vmul.f32 %v456, %v463
        %s467 = scalar_lea.vmem %s346, 2
        %468 = vst [vmem:[%s467] sm:$0x3] %v466
        %v469 = vmul.f32 %v459, %v463
        %s470 = scalar_lea.vmem %s346, 4
        %471 = vst [vmem:[%s470] sm:$0x3] %v469
        %p472 = scmp.lt.s32.totalorder %s24, 1
        %s473 = scalar_select %p472, %s24, 1
        %p474 = scmp.lt.s32.totalorder %s25, 0
        %s475 = scalar_select %p474, %s25, 0
        %s476 = smul.addr %s473, 3
        %s477 = sadd.s32 %s475, %s476
        %s478 = smul.addr %s477, 2
        %s479 = scalar_lea.vmem %s4, %s478
        %p480 = scmp.lt.s32.totalorder %s24, 1
        %s481 = scalar_select %p480, %s24, 1
        %p482 = scmp.lt.s32.totalorder %s25, 0
        %s483 = scalar_select %p482, %s25, 0
        %s484 = smul.addr %s481, 3
        %s485 = sadd.s32 %s483, %s484
        %s486 = smul.addr %s485, 2
        %s487 = scalar_lea.vmem %s5, %s486
        %p488 = scmp.lt.s32.totalorder %s24, 1
        %s489 = scalar_select %p488, %s24, 1
        %p490 = scmp.lt.s32.totalorder %s25, 0
        %s491 = scalar_select %p490, %s25, 0
        %s492 = smul.addr %s489, 4
        %s493 = sadd.s32 %s491, %s492
        %s494 = smul.addr %s493, 2
        %s495 = scalar_lea.vmem %s6, %s494
        // Predicated region
        $region49: #{seg_forward.1} parent=35 // pred_check
          %p496 = pneg %p143
        $region50: #{seg_forward.1} parent=35 // pred_check_branch
          %498 = sbr.rel (%p496) target = $region52
        $region51: #{seg_forward.1} parent=35 // pred_region
          _
        $region52: #{seg_forward.1} parent=35 // pred_fallthru
          _
        // Predicated region
        $region53: #{seg_forward.1} parent=35 // pred_check
          %p499 = pneg %p171
        $region54: #{seg_forward.1} parent=35 // pred_check_branch
          %501 = sbr.rel (%p499) target = $region56
        $region55: #{seg_forward.1} parent=35 // pred_region
          _
        $region56: #{seg_forward.1} parent=35 // pred_fallthru
          _
        // Predicated region
        $region57: #{seg_forward.1} parent=35 // pred_check
          %p502 = pneg %p199
        $region58: #{seg_forward.1} parent=35 // pred_check_branch
          %504 = sbr.rel (%p502) target = $region60
        $region59: #{seg_forward.1} parent=35 // pred_region
          _
        $region60: #{seg_forward.1} parent=35 // pred_fallthru
          _
      $region36: #{seg_forward.1} parent=5 // pred_fallthru
        _
      %p505 = scmp.le.s32.totalorder 2, %s15
      // Predicated region
      $region61: #{seg_forward.1} parent=5 // pred_check
        %p506 = pneg %p505
      $region62: #{seg_forward.1} parent=5 // pred_check_branch
        %508 = sbr.rel (%p506) target = $region64
      $region63: #{seg_forward.1} parent=5 // pred_region
        %s509 = ssub.s32 %s15, 2
        // Predicated region
        $region65: #{seg_forward.1} parent=63 // pred_check
          %p510 = pneg %p149
        $region66: #{seg_forward.1} parent=63 // pred_check_branch
          %512 = sbr.rel (%p510) target = $region68
        $region67: #{seg_forward.1} parent=63 // pred_region
          %p513 = scmp.lt.s32.totalorder %s26, 1
          %s514 = scalar_select %p513, %s26, 1
          %p515 = scmp.lt.s32.totalorder %s27, 0
          %s516 = scalar_select %p515, %s27, 0
          %s517 = smul.addr %s514, 3
          %s518 = sadd.s32 %s516, %s517
          %s519 = smul.addr %s518, 2
          %s520 = scalar_lea.vmem %s4, %s519
        $region68: #{seg_forward.1} parent=63 // pred_fallthru
          _
        // Predicated region
        $region69: #{seg_forward.1} parent=63 // pred_check
          %p521 = pneg %p177
        $region70: #{seg_forward.1} parent=63 // pred_check_branch
          %523 = sbr.rel (%p521) target = $region72
        $region71: #{seg_forward.1} parent=63 // pred_region
          %p524 = scmp.lt.s32.totalorder %s26, 1
          %s525 = scalar_select %p524, %s26, 1
          %p526 = scmp.lt.s32.totalorder %s27, 0
          %s527 = scalar_select %p526, %s27, 0
          %s528 = smul.addr %s525, 3
          %s529 = sadd.s32 %s527, %s528
          %s530 = smul.addr %s529, 2
          %s531 = scalar_lea.vmem %s5, %s530
        $region72: #{seg_forward.1} parent=63 // pred_fallthru
          _
        // Predicated region
        $region73: #{seg_forward.1} parent=63 // pred_check
          %p532 = pneg %p205
        $region74: #{seg_forward.1} parent=63 // pred_check_branch
          %534 = sbr.rel (%p532) target = $region76
        $region75: #{seg_forward.1} parent=63 // pred_region
          %p535 = scmp.lt.s32.totalorder %s26, 1
          %s536 = scalar_select %p535, %s26, 1
          %p537 = scmp.lt.s32.totalorder %s27, 0
          %s538 = scalar_select %p537, %s27, 0
          %s539 = smul.addr %s536, 4
          %s540 = sadd.s32 %s538, %s539
          %s541 = smul.addr %s540, 2
          %s542 = scalar_lea.vmem %s6, %s541
        $region76: #{seg_forward.1} parent=63 // pred_fallthru
          _
      $region64: #{seg_forward.1} parent=5 // pred_fallthru
        _
    $region6: #{seg_forward.1} parent=1 // loop_footer
      %s19 = sadd.s32 1, %s15
    $region7: #{seg_forward.1} parent=1 // loop_footer_branch
      %14 = sbr.rel target = $region3
    $region8: #{seg_forward.1} parent=1 // loop_exit
      _
    %543 = vsyncpa [#allocation3], 1
    %s544 = scalar_lea.sflag [#allocation3], 1
    %545 = vsyncpa %s544, 1
    %546 = vsyncpa [#allocation5], 1

</llo_original>
